<compile_context>
chip_gen: v6e
topology: v6e:2x2x1
jax: 0.10.0
libtpu: 0.0.40
codegen_flags: <defaults>
</compile_context>

<pallas_src>
import functools

import jax
import jax.numpy as jnp
from jax import lax
from jax.experimental import pallas as pl
from jax.experimental.pallas import tpu as pltpu


def _two_tensorcores_per_chip():
    """True on chips with 2 TensorCores per chip (v7x); False on v5e/v6e."""
    try:
        kind = jax.devices()[0].device_kind.lower()
    except Exception:
        return False
    return ("v7" in kind) or ("7x" in kind)


def _make_conv_relu_kernel(NB, Cin, KH, KW, Wp, Cout, P, Ho1, Wo1):
    """Fused im2col + single GEMM + bias + ReLU + compaction for NB samples."""

    def kernel(x_ref, w_ref, b_ref, o_ref):
        # x_ref: (NB, Cin, Lin)   zero-padded, flattened samples (halo in VMEM)
        # w_ref: (Cout, KH*KW*Cin)   b_ref: (Cout, 1)
        # o_ref: (NB, Cout, Ho1*Wo1) compact stride-1 output (lane-dense)
        w = w_ref[...]
        b = b_ref[...]
        for n in range(NB):                      # static Python loop (NB is 1 or 2)
            # Fused im2col: each (kh, kw) tap is a constant lane-shifted window;
            # stack all taps once -> one (KH*KW*Cin, P) matrix -> one MXU dot.
            taps = [x_ref[n, :, pl.ds(kh * Wp + kw, P)]
                    for kh in range(KH) for kw in range(KW)]
            col = jnp.concatenate(taps, axis=0)                      # (K*K*Cin, P)
            acc = jnp.dot(w, col, preferred_element_type=jnp.float32)  # (Cout, P)
            res = jnp.maximum(acc + b, 0.0).astype(o_ref.dtype)
            # In-kernel compaction: drop the (Wp - Wo1) junk columns of each
            # output row with static lane slices (XLU/VPU slack, no HBM waste).
            for h in range(Ho1):
                o_ref[n, :, h * Wo1:(h + 1) * Wo1] = res[:, h * Wp:h * Wp + Wo1]

    return kernel


@functools.partial(jax.jit, static_argnames=("stride", "padding"))
def conv_block_forward(x, weight, bias, *, stride=1, padding=1):
    """ConvBlock.forward: relu(conv2d(x, weight, bias)).  x is NCHW."""
    N, Cin, H, W = x.shape
    Cout, _, KH, KW = weight.shape
    Hp, Wp = H + 2 * padding, W + 2 * padding
    Ho1, Wo1 = Hp - KH + 1, Wp - KW + 1          # stride-1 output extents

    # Lane-padded flat window length for the single dot; junk lanes never
    # leave the kernel (compaction happens before the store).
    P = ((Ho1 * Wp + 127) // 128) * 128
    s_max = (KH - 1) * Wp + (KW - 1)             # largest tap lane shift
    Lin = s_max + P
    Hp_ext = -(-Lin // Wp)                       # ceil(Lin / Wp)
    Lin_r = Hp_ext * Wp                          # flat halo length (multiple of Wp)

    # ---- single merged pad (halo + tail) + free row-major flatten ----
    xflat = jnp.pad(
        x, ((0, 0), (0, 0), (padding, Hp_ext - H - padding), (padding, padding))
    ).reshape(N, Cin, Lin_r)

    # Single (Cout, KH*KW*Cin) weight matrix, column order = (kh, kw, cin).
    w2 = jnp.transpose(weight, (0, 2, 3, 1)).reshape(Cout, KH * KW * Cin)
    b_col = bias.reshape(Cout, 1).astype(jnp.float32)

    # Grid: 1 step over the whole batch on 1-TC chips (v5e/v6e); 2 parallel
    # steps (one sample each) on 2-TC v7x so both cores get work.
    steps = 2 if (_two_tensorcores_per_chip() and N >= 2 and N % 2 == 0) else 1
    NB = N // steps
    OutP = Ho1 * Wo1

    itemsize = jnp.dtype(x.dtype).itemsize
    cost = pl.CostEstimate(
        flops=2 * N * Cout * P * KH * KW * Cin,
        transcendentals=0,
        bytes_accessed=(xflat.size + w2.size + b_col.size + N * Cout * OutP)
        * itemsize,
    )

    kernel = _make_conv_relu_kernel(NB, Cin, KH, KW, Wp, Cout, P, Ho1, Wo1)
    out_c = pl.pallas_call(
        kernel,
        out_shape=jax.ShapeDtypeStruct((N, Cout, OutP), x.dtype),
        grid=(steps,),
        in_specs=[
            pl.BlockSpec((NB, Cin, Lin_r), lambda i: (i, 0, 0)),
            pl.BlockSpec((Cout, KH * KW * Cin), lambda i: (0, 0)),
            pl.BlockSpec((Cout, 1), lambda i: (0, 0)),
        ],
        out_specs=pl.BlockSpec((NB, Cout, OutP), lambda i: (i, 0, 0)),
        compiler_params=pltpu.CompilerParams(
            dimension_semantics=("parallel",)),
        cost_estimate=cost,
    )(xflat, w2, b_col)

    # Free reshape to NCHW; no junk columns left to slice off.
    out = out_c.reshape(N, Cout, Ho1, Wo1)
    if stride > 1:
        # TODO(synk): fold stride>1 into the in-kernel compaction instead of
        # computing the full stride-1 grid and subsampling here.
        out = out[:, :, ::stride, ::stride]
    return out


if __name__ == "__main__":
    # ConvBlock(in_plane=4, out_plane=8, stride=1, k_size=3, padding=1)
    in_plane, out_plane, k_size = 4, 8, 3
    N, H, W = 2, 16, 16

    key = jax.random.PRNGKey(0)
    kx, kw, kb = jax.random.split(key, 3)

    x = jax.random.normal(kx, (N, in_plane, H, W), dtype=jnp.float32)
    fan_in = in_plane * k_size * k_size
    bound = 1.0 / (fan_in ** 0.5)
    weight = jax.random.uniform(kw, (out_plane, in_plane, k_size, k_size),
                                minval=-bound, maxval=bound, dtype=jnp.float32)
    bias = jax.random.uniform(kb, (out_plane,), minval=-bound, maxval=bound,
                              dtype=jnp.float32)

    out = conv_block_forward(x, weight, bias, stride=1, padding=1)
    out = jax.block_until_ready(out)

    # Reference (PyTorch semantics): conv2d + bias + relu via XLA.
    ref = lax.conv_general_dilated(
        x, weight, window_strides=(1, 1), padding=((1, 1), (1, 1)),
        dimension_numbers=("NCHW", "OIHW", "NCHW"))
    ref = jnp.maximum(ref + bias.reshape(1, out_plane, 1, 1), 0.0)
    assert out.shape == (N, out_plane, H, W)
    assert jnp.allclose(out, ref, atol=1e-5, rtol=1e-5)

    print("KERNEL_OK")
</pallas_src>

<mosaic_0001>
module attributes {stable_mosaic.version = 11 : i64} {
  func.func @kernel(%arg0: i32, %arg1: memref<2x4x432xf32, #tpu.memory_space<vmem>>, %arg2: memref<8x36xf32, #tpu.memory_space<vmem>>, %arg3: memref<8x1xf32, #tpu.memory_space<vmem>>, %arg4: memref<2x8x256xf32, #tpu.memory_space<vmem>>) attributes {dimension_semantics = [#tpu.dimension_semantics<parallel>], iteration_bounds = array<i64: 1>, scalar_prefetch = 0 : i64, scratch_operands = 0 : i64, tpu.core_type = #tpu.core_type<tc>, window_params = [{transform_indices = @transform_0, window_bounds = array<i64: 2, 4, 432>}, {pipeline_mode = #tpu.pipeline_mode<synchronous>, transform_indices = @transform_1, window_bounds = array<i64: 8, 36>}, {pipeline_mode = #tpu.pipeline_mode<synchronous>, transform_indices = @transform_2, window_bounds = array<i64: 8, 1>}, {transform_indices = @transform_3, window_bounds = array<i64: 2, 8, 256>}]} {
    %c0 = arith.constant 0 : index
    %c0_0 = arith.constant 0 : index
    %0 = vector.load %arg2[%c0, %c0_0] : memref<8x36xf32, #tpu.memory_space<vmem>>, vector<8x36xf32>
    %c0_1 = arith.constant 0 : index
    %c0_2 = arith.constant 0 : index
    %1 = vector.load %arg3[%c0_1, %c0_2] : memref<8x1xf32, #tpu.memory_space<vmem>>, vector<8x1xf32>
    %c0_3 = arith.constant 0 : index
    %c0_4 = arith.constant 0 : index
    %c0_5 = arith.constant 0 : index
    %2 = vector.load %arg1[%c0_3, %c0_4, %c0_5] : memref<2x4x432xf32, #tpu.memory_space<vmem>>, vector<1x4x384xf32>
    %3 = vector.shape_cast %2 : vector<1x4x384xf32> to vector<4x384xf32>
    %c0_6 = arith.constant 0 : index
    %c0_7 = arith.constant 0 : index
    %c1 = arith.constant 1 : index
    %4 = vector.load %arg1[%c0_6, %c0_7, %c1] : memref<2x4x432xf32, #tpu.memory_space<vmem>>, vector<1x4x384xf32>
    %5 = vector.shape_cast %4 : vector<1x4x384xf32> to vector<4x384xf32>
    %c0_8 = arith.constant 0 : index
    %c0_9 = arith.constant 0 : index
    %c2 = arith.constant 2 : index
    %6 = vector.load %arg1[%c0_8, %c0_9, %c2] : memref<2x4x432xf32, #tpu.memory_space<vmem>>, vector<1x4x384xf32>
    %7 = vector.shape_cast %6 : vector<1x4x384xf32> to vector<4x384xf32>
    %c0_10 = arith.constant 0 : index
    %c0_11 = arith.constant 0 : index
    %c18 = arith.constant 18 : index
    %8 = vector.load %arg1[%c0_10, %c0_11, %c18] : memref<2x4x432xf32, #tpu.memory_space<vmem>>, vector<1x4x384xf32>
    %9 = vector.shape_cast %8 : vector<1x4x384xf32> to vector<4x384xf32>
    %c0_12 = arith.constant 0 : index
    %c0_13 = arith.constant 0 : index
    %c19 = arith.constant 19 : index
    %10 = vector.load %arg1[%c0_12, %c0_13, %c19] : memref<2x4x432xf32, #tpu.memory_space<vmem>>, vector<1x4x384xf32>
    %11 = vector.shape_cast %10 : vector<1x4x384xf32> to vector<4x384xf32>
    %c0_14 = arith.constant 0 : index
    %c0_15 = arith.constant 0 : index
    %c20 = arith.constant 20 : index
    %12 = vector.load %arg1[%c0_14, %c0_15, %c20] : memref<2x4x432xf32, #tpu.memory_space<vmem>>, vector<1x4x384xf32>
    %13 = vector.shape_cast %12 : vector<1x4x384xf32> to vector<4x384xf32>
    %c0_16 = arith.constant 0 : index
    %c0_17 = arith.constant 0 : index
    %c36 = arith.constant 36 : index
    %14 = vector.load %arg1[%c0_16, %c0_17, %c36] : memref<2x4x432xf32, #tpu.memory_space<vmem>>, vector<1x4x384xf32>
    %15 = vector.shape_cast %14 : vector<1x4x384xf32> to vector<4x384xf32>
    %c0_18 = arith.constant 0 : index
    %c0_19 = arith.constant 0 : index
    %c37 = arith.constant 37 : index
    %16 = vector.load %arg1[%c0_18, %c0_19, %c37] : memref<2x4x432xf32, #tpu.memory_space<vmem>>, vector<1x4x384xf32>
    %17 = vector.shape_cast %16 : vector<1x4x384xf32> to vector<4x384xf32>
    %c0_20 = arith.constant 0 : index
    %c0_21 = arith.constant 0 : index
    %c38 = arith.constant 38 : index
    %18 = vector.load %arg1[%c0_20, %c0_21, %c38] : memref<2x4x432xf32, #tpu.memory_space<vmem>>, vector<1x4x384xf32>
    %19 = vector.shape_cast %18 : vector<1x4x384xf32> to vector<4x384xf32>
    %20 = tpu.concatenate %3, %5, %7, %9, %11, %13, %15, %17, %19 in 0 : vector<4x384xf32>, vector<4x384xf32>, vector<4x384xf32>, vector<4x384xf32>, vector<4x384xf32>, vector<4x384xf32>, vector<4x384xf32>, vector<4x384xf32>, vector<4x384xf32> -> vector<36x384xf32>
    %cst = arith.constant dense<0.000000e+00> : vector<8x384xf32>
    %21 = tpu.matmul %0, %20, %cst {dimension_numbers = #tpu.dot_dimension_numbers<[1], [0], [0], [1], [0, 0, 1, 1], [], []>} : vector<8x36xf32>, vector<36x384xf32>, vector<8x384xf32> -> vector<8x384xf32>
    %22 = vector.broadcast %1 : vector<8x1xf32> to vector<8x384xf32>
    %23 = arith.addf %21, %22 : vector<8x384xf32>
    %cst_22 = arith.constant 0.000000e+00 : f32
    %24 = vector.broadcast %cst_22 : f32 to vector<8x384xf32>
    %25 = arith.maximumf %23, %24 : vector<8x384xf32>
    %26 = vector.extract_strided_slice %25 {offsets = [0, 0], sizes = [8, 16], strides = [1, 1]} : vector<8x384xf32> to vector<8x16xf32>
    %c0_23 = arith.constant 0 : index
    %c0_24 = arith.constant 0 : index
    %c0_25 = arith.constant 0 : index
    %27 = vector.load %arg4[%c0_23, %c0_24, %c0_25] : memref<2x8x256xf32, #tpu.memory_space<vmem>>, vector<1x8x16xf32>
    %28 = vector.shape_cast %27 : vector<1x8x16xf32> to vector<8x16xf32>
    %29 = vector.shape_cast %26 : vector<8x16xf32> to vector<1x8x16xf32>
    tpu.vector_store %arg4[%c0_23, %c0_24, %c0_25], %29 {strides = array<i32>} : memref<2x8x256xf32, #tpu.memory_space<vmem>>, vector<1x8x16xf32>,
    %30 = vector.extract_strided_slice %25 {offsets = [0, 18], sizes = [8, 16], strides = [1, 1]} : vector<8x384xf32> to vector<8x16xf32>
    %c0_26 = arith.constant 0 : index
    %c0_27 = arith.constant 0 : index
    %c16 = arith.constant 16 : index
    %31 = vector.load %arg4[%c0_26, %c0_27, %c16] : memref<2x8x256xf32, #tpu.memory_space<vmem>>, vector<1x8x16xf32>
    %32 = vector.shape_cast %31 : vector<1x8x16xf32> to vector<8x16xf32>
    %33 = vector.shape_cast %30 : vector<8x16xf32> to vector<1x8x16xf32>
    tpu.vector_store %arg4[%c0_26, %c0_27, %c16], %33 {strides = array<i32>} : memref<2x8x256xf32, #tpu.memory_space<vmem>>, vector<1x8x16xf32>,
    %34 = vector.extract_strided_slice %25 {offsets = [0, 36], sizes = [8, 16], strides = [1, 1]} : vector<8x384xf32> to vector<8x16xf32>
    %c0_28 = arith.constant 0 : index
    %c0_29 = arith.constant 0 : index
    %c32 = arith.constant 32 : index
    %35 = vector.load %arg4[%c0_28, %c0_29, %c32] : memref<2x8x256xf32, #tpu.memory_space<vmem>>, vector<1x8x16xf32>
    %36 = vector.shape_cast %35 : vector<1x8x16xf32> to vector<8x16xf32>
    %37 = vector.shape_cast %34 : vector<8x16xf32> to vector<1x8x16xf32>
    tpu.vector_store %arg4[%c0_28, %c0_29, %c32], %37 {strides = array<i32>} : memref<2x8x256xf32, #tpu.memory_space<vmem>>, vector<1x8x16xf32>,
    %38 = vector.extract_strided_slice %25 {offsets = [0, 54], sizes = [8, 16], strides = [1, 1]} : vector<8x384xf32> to vector<8x16xf32>
    %c0_30 = arith.constant 0 : index
    %c0_31 = arith.constant 0 : index
    %c48 = arith.constant 48 : index
    %39 = vector.load %arg4[%c0_30, %c0_31, %c48] : memref<2x8x256xf32, #tpu.memory_space<vmem>>, vector<1x8x16xf32>
    %40 = vector.shape_cast %39 : vector<1x8x16xf32> to vector<8x16xf32>
    %41 = vector.shape_cast %38 : vector<8x16xf32> to vector<1x8x16xf32>
    tpu.vector_store %arg4[%c0_30, %c0_31, %c48], %41 {strides = array<i32>} : memref<2x8x256xf32, #tpu.memory_space<vmem>>, vector<1x8x16xf32>,
    %42 = vector.extract_strided_slice %25 {offsets = [0, 72], sizes = [8, 16], strides = [1, 1]} : vector<8x384xf32> to vector<8x16xf32>
    %c0_32 = arith.constant 0 : index
    %c0_33 = arith.constant 0 : index
    %c64 = arith.constant 64 : index
    %43 = vector.load %arg4[%c0_32, %c0_33, %c64] : memref<2x8x256xf32, #tpu.memory_space<vmem>>, vector<1x8x16xf32>
    %44 = vector.shape_cast %43 : vector<1x8x16xf32> to vector<8x16xf32>
    %45 = vector.shape_cast %42 : vector<8x16xf32> to vector<1x8x16xf32>
    tpu.vector_store %arg4[%c0_32, %c0_33, %c64], %45 {strides = array<i32>} : memref<2x8x256xf32, #tpu.memory_space<vmem>>, vector<1x8x16xf32>,
    %46 = vector.extract_strided_slice %25 {offsets = [0, 90], sizes = [8, 16], strides = [1, 1]} : vector<8x384xf32> to vector<8x16xf32>
    %c0_34 = arith.constant 0 : index
    %c0_35 = arith.constant 0 : index
    %c80 = arith.constant 80 : index
    %47 = vector.load %arg4[%c0_34, %c0_35, %c80] : memref<2x8x256xf32, #tpu.memory_space<vmem>>, vector<1x8x16xf32>
    %48 = vector.shape_cast %47 : vector<1x8x16xf32> to vector<8x16xf32>
    %49 = vector.shape_cast %46 : vector<8x16xf32> to vector<1x8x16xf32>
    tpu.vector_store %arg4[%c0_34, %c0_35, %c80], %49 {strides = array<i32>} : memref<2x8x256xf32, #tpu.memory_space<vmem>>, vector<1x8x16xf32>,
    %50 = vector.extract_strided_slice %25 {offsets = [0, 108], sizes = [8, 16], strides = [1, 1]} : vector<8x384xf32> to vector<8x16xf32>
    %c0_36 = arith.constant 0 : index
    %c0_37 = arith.constant 0 : index
    %c96 = arith.constant 96 : index
    %51 = vector.load %arg4[%c0_36, %c0_37, %c96] : memref<2x8x256xf32, #tpu.memory_space<vmem>>, vector<1x8x16xf32>
    %52 = vector.shape_cast %51 : vector<1x8x16xf32> to vector<8x16xf32>
    %53 = vector.shape_cast %50 : vector<8x16xf32> to vector<1x8x16xf32>
    tpu.vector_store %arg4[%c0_36, %c0_37, %c96], %53 {strides = array<i32>} : memref<2x8x256xf32, #tpu.memory_space<vmem>>, vector<1x8x16xf32>,
    %54 = vector.extract_strided_slice %25 {offsets = [0, 126], sizes = [8, 16], strides = [1, 1]} : vector<8x384xf32> to vector<8x16xf32>
    %c0_38 = arith.constant 0 : index
    %c0_39 = arith.constant 0 : index
    %c112 = arith.constant 112 : index
    %55 = vector.load %arg4[%c0_38, %c0_39, %c112] : memref<2x8x256xf32, #tpu.memory_space<vmem>>, vector<1x8x16xf32>
    %56 = vector.shape_cast %55 : vector<1x8x16xf32> to vector<8x16xf32>
    %57 = vector.shape_cast %54 : vector<8x16xf32> to vector<1x8x16xf32>
    tpu.vector_store %arg4[%c0_38, %c0_39, %c112], %57 {strides = array<i32>} : memref<2x8x256xf32, #tpu.memory_space<vmem>>, vector<1x8x16xf32>,
    %58 = vector.extract_strided_slice %25 {offsets = [0, 144], sizes = [8, 16], strides = [1, 1]} : vector<8x384xf32> to vector<8x16xf32>
    %c0_40 = arith.constant 0 : index
    %c0_41 = arith.constant 0 : index
    %c128 = arith.constant 128 : index
    %59 = vector.load %arg4[%c0_40, %c0_41, %c128] : memref<2x8x256xf32, #tpu.memory_space<vmem>>, vector<1x8x16xf32>
    %60 = vector.shape_cast %59 : vector<1x8x16xf32> to vector<8x16xf32>
    %61 = vector.shape_cast %58 : vector<8x16xf32> to vector<1x8x16xf32>
    tpu.vector_store %arg4[%c0_40, %c0_41, %c128], %61 {strides = array<i32>} : memref<2x8x256xf32, #tpu.memory_space<vmem>>, vector<1x8x16xf32>,
    %62 = vector.extract_strided_slice %25 {offsets = [0, 162], sizes = [8, 16], strides = [1, 1]} : vector<8x384xf32> to vector<8x16xf32>
    %c0_42 = arith.constant 0 : index
    %c0_43 = arith.constant 0 : index
    %c144 = arith.constant 144 : index
    %63 = vector.load %arg4[%c0_42, %c0_43, %c144] : memref<2x8x256xf32, #tpu.memory_space<vmem>>, vector<1x8x16xf32>
    %64 = vector.shape_cast %63 : vector<1x8x16xf32> to vector<8x16xf32>
    %65 = vector.shape_cast %62 : vector<8x16xf32> to vector<1x8x16xf32>
    tpu.vector_store %arg4[%c0_42, %c0_43, %c144], %65 {strides = array<i32>} : memref<2x8x256xf32, #tpu.memory_space<vmem>>, vector<1x8x16xf32>,
    %66 = vector.extract_strided_slice %25 {offsets = [0, 180], sizes = [8, 16], strides = [1, 1]} : vector<8x384xf32> to vector<8x16xf32>
    %c0_44 = arith.constant 0 : index
    %c0_45 = arith.constant 0 : index
    %c160 = arith.constant 160 : index
    %67 = vector.load %arg4[%c0_44, %c0_45, %c160] : memref<2x8x256xf32, #tpu.memory_space<vmem>>, vector<1x8x16xf32>
    %68 = vector.shape_cast %67 : vector<1x8x16xf32> to vector<8x16xf32>
    %69 = vector.shape_cast %66 : vector<8x16xf32> to vector<1x8x16xf32>
    tpu.vector_store %arg4[%c0_44, %c0_45, %c160], %69 {strides = array<i32>} : memref<2x8x256xf32, #tpu.memory_space<vmem>>, vector<1x8x16xf32>,
    %70 = vector.extract_strided_slice %25 {offsets = [0, 198], sizes = [8, 16], strides = [1, 1]} : vector<8x384xf32> to vector<8x16xf32>
    %c0_46 = arith.constant 0 : index
    %c0_47 = arith.constant 0 : index
    %c176 = arith.constant 176 : index
    %71 = vector.load %arg4[%c0_46, %c0_47, %c176] : memref<2x8x256xf32, #tpu.memory_space<vmem>>, vector<1x8x16xf32>
    %72 = vector.shape_cast %71 : vector<1x8x16xf32> to vector<8x16xf32>
    %73 = vector.shape_cast %70 : vector<8x16xf32> to vector<1x8x16xf32>
    tpu.vector_store %arg4[%c0_46, %c0_47, %c176], %73 {strides = array<i32>} : memref<2x8x256xf32, #tpu.memory_space<vmem>>, vector<1x8x16xf32>,
    %74 = vector.extract_strided_slice %25 {offsets = [0, 216], sizes = [8, 16], strides = [1, 1]} : vector<8x384xf32> to vector<8x16xf32>
    %c0_48 = arith.constant 0 : index
    %c0_49 = arith.constant 0 : index
    %c192 = arith.constant 192 : index
    %75 = vector.load %arg4[%c0_48, %c0_49, %c192] : memref<2x8x256xf32, #tpu.memory_space<vmem>>, vector<1x8x16xf32>
    %76 = vector.shape_cast %75 : vector<1x8x16xf32> to vector<8x16xf32>
    %77 = vector.shape_cast %74 : vector<8x16xf32> to vector<1x8x16xf32>
    tpu.vector_store %arg4[%c0_48, %c0_49, %c192], %77 {strides = array<i32>} : memref<2x8x256xf32, #tpu.memory_space<vmem>>, vector<1x8x16xf32>,
    %78 = vector.extract_strided_slice %25 {offsets = [0, 234], sizes = [8, 16], strides = [1, 1]} : vector<8x384xf32> to vector<8x16xf32>
    %c0_50 = arith.constant 0 : index
    %c0_51 = arith.constant 0 : index
    %c208 = arith.constant 208 : index
    %79 = vector.load %arg4[%c0_50, %c0_51, %c208] : memref<2x8x256xf32, #tpu.memory_space<vmem>>, vector<1x8x16xf32>
    %80 = vector.shape_cast %79 : vector<1x8x16xf32> to vector<8x16xf32>
    %81 = vector.shape_cast %78 : vector<8x16xf32> to vector<1x8x16xf32>
    tpu.vector_store %arg4[%c0_50, %c0_51, %c208], %81 {strides = array<i32>} : memref<2x8x256xf32, #tpu.memory_space<vmem>>, vector<1x8x16xf32>,
    %82 = vector.extract_strided_slice %25 {offsets = [0, 252], sizes = [8, 16], strides = [1, 1]} : vector<8x384xf32> to vector<8x16xf32>
    %c0_52 = arith.constant 0 : index
    %c0_53 = arith.constant 0 : index
    %c224 = arith.constant 224 : index
    %83 = vector.load %arg4[%c0_52, %c0_53, %c224] : memref<2x8x256xf32, #tpu.memory_space<vmem>>, vector<1x8x16xf32>
    %84 = vector.shape_cast %83 : vector<1x8x16xf32> to vector<8x16xf32>
    %85 = vector.shape_cast %82 : vector<8x16xf32> to vector<1x8x16xf32>
    tpu.vector_store %arg4[%c0_52, %c0_53, %c224], %85 {strides = array<i32>} : memref<2x8x256xf32, #tpu.memory_space<vmem>>, vector<1x8x16xf32>,
    %86 = vector.extract_strided_slice %25 {offsets = [0, 270], sizes = [8, 16], strides = [1, 1]} : vector<8x384xf32> to vector<8x16xf32>
    %c0_54 = arith.constant 0 : index
    %c0_55 = arith.constant 0 : index
    %c240 = arith.constant 240 : index
    %87 = vector.load %arg4[%c0_54, %c0_55, %c240] : memref<2x8x256xf32, #tpu.memory_space<vmem>>, vector<1x8x16xf32>
    %88 = vector.shape_cast %87 : vector<1x8x16xf32> to vector<8x16xf32>
    %89 = vector.shape_cast %86 : vector<8x16xf32> to vector<1x8x16xf32>
    tpu.vector_store %arg4[%c0_54, %c0_55, %c240], %89 {strides = array<i32>} : memref<2x8x256xf32, #tpu.memory_space<vmem>>, vector<1x8x16xf32>,
    %c1_56 = arith.constant 1 : index
    %c0_57 = arith.constant 0 : index
    %c0_58 = arith.constant 0 : index
    %90 = vector.load %arg1[%c1_56, %c0_57, %c0_58] : memref<2x4x432xf32, #tpu.memory_space<vmem>>, vector<1x4x384xf32>
    %91 = vector.shape_cast %90 : vector<1x4x384xf32> to vector<4x384xf32>
    %c1_59 = arith.constant 1 : index
    %c0_60 = arith.constant 0 : index
    %c1_61 = arith.constant 1 : index
    %92 = vector.load %arg1[%c1_59, %c0_60, %c1_61] : memref<2x4x432xf32, #tpu.memory_space<vmem>>, vector<1x4x384xf32>
    %93 = vector.shape_cast %92 : vector<1x4x384xf32> to vector<4x384xf32>
    %c1_62 = arith.constant 1 : index
    %c0_63 = arith.constant 0 : index
    %c2_64 = arith.constant 2 : index
    %94 = vector.load %arg1[%c1_62, %c0_63, %c2_64] : memref<2x4x432xf32, #tpu.memory_space<vmem>>, vector<1x4x384xf32>
    %95 = vector.shape_cast %94 : vector<1x4x384xf32> to vector<4x384xf32>
    %c1_65 = arith.constant 1 : index
    %c0_66 = arith.constant 0 : index
    %c18_67 = arith.constant 18 : index
    %96 = vector.load %arg1[%c1_65, %c0_66, %c18_67] : memref<2x4x432xf32, #tpu.memory_space<vmem>>, vector<1x4x384xf32>
    %97 = vector.shape_cast %96 : vector<1x4x384xf32> to vector<4x384xf32>
    %c1_68 = arith.constant 1 : index
    %c0_69 = arith.constant 0 : index
    %c19_70 = arith.constant 19 : index
    %98 = vector.load %arg1[%c1_68, %c0_69, %c19_70] : memref<2x4x432xf32, #tpu.memory_space<vmem>>, vector<1x4x384xf32>
    %99 = vector.shape_cast %98 : vector<1x4x384xf32> to vector<4x384xf32>
    %c1_71 = arith.constant 1 : index
    %c0_72 = arith.constant 0 : index
    %c20_73 = arith.constant 20 : index
    %100 = vector.load %arg1[%c1_71, %c0_72, %c20_73] : memref<2x4x432xf32, #tpu.memory_space<vmem>>, vector<1x4x384xf32>
    %101 = vector.shape_cast %100 : vector<1x4x384xf32> to vector<4x384xf32>
    %c1_74 = arith.constant 1 : index
    %c0_75 = arith.constant 0 : index
    %c36_76 = arith.constant 36 : index
    %102 = vector.load %arg1[%c1_74, %c0_75, %c36_76] : memref<2x4x432xf32, #tpu.memory_space<vmem>>, vector<1x4x384xf32>
    %103 = vector.shape_cast %102 : vector<1x4x384xf32> to vector<4x384xf32>
    %c1_77 = arith.constant 1 : index
    %c0_78 = arith.constant 0 : index
    %c37_79 = arith.constant 37 : index
    %104 = vector.load %arg1[%c1_77, %c0_78, %c37_79] : memref<2x4x432xf32, #tpu.memory_space<vmem>>, vector<1x4x384xf32>
    %105 = vector.shape_cast %104 : vector<1x4x384xf32> to vector<4x384xf32>
    %c1_80 = arith.constant 1 : index
    %c0_81 = arith.constant 0 : index
    %c38_82 = arith.constant 38 : index
    %106 = vector.load %arg1[%c1_80, %c0_81, %c38_82] : memref<2x4x432xf32, #tpu.memory_space<vmem>>, vector<1x4x384xf32>
    %107 = vector.shape_cast %106 : vector<1x4x384xf32> to vector<4x384xf32>
    %108 = tpu.concatenate %91, %93, %95, %97, %99, %101, %103, %105, %107 in 0 : vector<4x384xf32>, vector<4x384xf32>, vector<4x384xf32>, vector<4x384xf32>, vector<4x384xf32>, vector<4x384xf32>, vector<4x384xf32>, vector<4x384xf32>, vector<4x384xf32> -> vector<36x384xf32>
    %cst_83 = arith.constant dense<0.000000e+00> : vector<8x384xf32>
    %109 = tpu.matmul %0, %108, %cst_83 {dimension_numbers = #tpu.dot_dimension_numbers<[1], [0], [0], [1], [0, 0, 1, 1], [], []>} : vector<8x36xf32>, vector<36x384xf32>, vector<8x384xf32> -> vector<8x384xf32>
    %110 = vector.broadcast %1 : vector<8x1xf32> to vector<8x384xf32>
    %111 = arith.addf %109, %110 : vector<8x384xf32>
    %cst_84 = arith.constant 0.000000e+00 : f32
    %112 = vector.broadcast %cst_84 : f32 to vector<8x384xf32>
    %113 = arith.maximumf %111, %112 : vector<8x384xf32>
    %114 = vector.extract_strided_slice %113 {offsets = [0, 0], sizes = [8, 16], strides = [1, 1]} : vector<8x384xf32> to vector<8x16xf32>
    %c1_85 = arith.constant 1 : index
    %c0_86 = arith.constant 0 : index
    %c0_87 = arith.constant 0 : index
    %115 = vector.load %arg4[%c1_85, %c0_86, %c0_87] : memref<2x8x256xf32, #tpu.memory_space<vmem>>, vector<1x8x16xf32>
    %116 = vector.shape_cast %115 : vector<1x8x16xf32> to vector<8x16xf32>
    %117 = vector.shape_cast %114 : vector<8x16xf32> to vector<1x8x16xf32>
    tpu.vector_store %arg4[%c1_85, %c0_86, %c0_87], %117 {strides = array<i32>} : memref<2x8x256xf32, #tpu.memory_space<vmem>>, vector<1x8x16xf32>,
    %118 = vector.extract_strided_slice %113 {offsets = [0, 18], sizes = [8, 16], strides = [1, 1]} : vector<8x384xf32> to vector<8x16xf32>
    %c1_88 = arith.constant 1 : index
    %c0_89 = arith.constant 0 : index
    %c16_90 = arith.constant 16 : index
    %119 = vector.load %arg4[%c1_88, %c0_89, %c16_90] : memref<2x8x256xf32, #tpu.memory_space<vmem>>, vector<1x8x16xf32>
    %120 = vector.shape_cast %119 : vector<1x8x16xf32> to vector<8x16xf32>
    %121 = vector.shape_cast %118 : vector<8x16xf32> to vector<1x8x16xf32>
    tpu.vector_store %arg4[%c1_88, %c0_89, %c16_90], %121 {strides = array<i32>} : memref<2x8x256xf32, #tpu.memory_space<vmem>>, vector<1x8x16xf32>,
    %122 = vector.extract_strided_slice %113 {offsets = [0, 36], sizes = [8, 16], strides = [1, 1]} : vector<8x384xf32> to vector<8x16xf32>
    %c1_91 = arith.constant 1 : index
    %c0_92 = arith.constant 0 : index
    %c32_93 = arith.constant 32 : index
    %123 = vector.load %arg4[%c1_91, %c0_92, %c32_93] : memref<2x8x256xf32, #tpu.memory_space<vmem>>, vector<1x8x16xf32>
    %124 = vector.shape_cast %123 : vector<1x8x16xf32> to vector<8x16xf32>
    %125 = vector.shape_cast %122 : vector<8x16xf32> to vector<1x8x16xf32>
    tpu.vector_store %arg4[%c1_91, %c0_92, %c32_93], %125 {strides = array<i32>} : memref<2x8x256xf32, #tpu.memory_space<vmem>>, vector<1x8x16xf32>,
    %126 = vector.extract_strided_slice %113 {offsets = [0, 54], sizes = [8, 16], strides = [1, 1]} : vector<8x384xf32> to vector<8x16xf32>
    %c1_94 = arith.constant 1 : index
    %c0_95 = arith.constant 0 : index
    %c48_96 = arith.constant 48 : index
    %127 = vector.load %arg4[%c1_94, %c0_95, %c48_96] : memref<2x8x256xf32, #tpu.memory_space<vmem>>, vector<1x8x16xf32>
    %128 = vector.shape_cast %127 : vector<1x8x16xf32> to vector<8x16xf32>
    %129 = vector.shape_cast %126 : vector<8x16xf32> to vector<1x8x16xf32>
    tpu.vector_store %arg4[%c1_94, %c0_95, %c48_96], %129 {strides = array<i32>} : memref<2x8x256xf32, #tpu.memory_space<vmem>>, vector<1x8x16xf32>,
    %130 = vector.extract_strided_slice %113 {offsets = [0, 72], sizes = [8, 16], strides = [1, 1]} : vector<8x384xf32> to vector<8x16xf32>
    %c1_97 = arith.constant 1 : index
    %c0_98 = arith.constant 0 : index
    %c64_99 = arith.constant 64 : index
    %131 = vector.load %arg4[%c1_97, %c0_98, %c64_99] : memref<2x8x256xf32, #tpu.memory_space<vmem>>, vector<1x8x16xf32>
    %132 = vector.shape_cast %131 : vector<1x8x16xf32> to vector<8x16xf32>
    %133 = vector.shape_cast %130 : vector<8x16xf32> to vector<1x8x16xf32>
    tpu.vector_store %arg4[%c1_97, %c0_98, %c64_99], %133 {strides = array<i32>} : memref<2x8x256xf32, #tpu.memory_space<vmem>>, vector<1x8x16xf32>,
    %134 = vector.extract_strided_slice %113 {offsets = [0, 90], sizes = [8, 16], strides = [1, 1]} : vector<8x384xf32> to vector<8x16xf32>
    %c1_100 = arith.constant 1 : index
    %c0_101 = arith.constant 0 : index
    %c80_102 = arith.constant 80 : index
    %135 = vector.load %arg4[%c1_100, %c0_101, %c80_102] : memref<2x8x256xf32, #tpu.memory_space<vmem>>, vector<1x8x16xf32>
    %136 = vector.shape_cast %135 : vector<1x8x16xf32> to vector<8x16xf32>
    %137 = vector.shape_cast %134 : vector<8x16xf32> to vector<1x8x16xf32>
    tpu.vector_store %arg4[%c1_100, %c0_101, %c80_102], %137 {strides = array<i32>} : memref<2x8x256xf32, #tpu.memory_space<vmem>>, vector<1x8x16xf32>,
    %138 = vector.extract_strided_slice %113 {offsets = [0, 108], sizes = [8, 16], strides = [1, 1]} : vector<8x384xf32> to vector<8x16xf32>
    %c1_103 = arith.constant 1 : index
    %c0_104 = arith.constant 0 : index
    %c96_105 = arith.constant 96 : index
    %139 = vector.load %arg4[%c1_103, %c0_104, %c96_105] : memref<2x8x256xf32, #tpu.memory_space<vmem>>, vector<1x8x16xf32>
    %140 = vector.shape_cast %139 : vector<1x8x16xf32> to vector<8x16xf32>
    %141 = vector.shape_cast %138 : vector<8x16xf32> to vector<1x8x16xf32>
    tpu.vector_store %arg4[%c1_103, %c0_104, %c96_105], %141 {strides = array<i32>} : memref<2x8x256xf32, #tpu.memory_space<vmem>>, vector<1x8x16xf32>,
    %142 = vector.extract_strided_slice %113 {offsets = [0, 126], sizes = [8, 16], strides = [1, 1]} : vector<8x384xf32> to vector<8x16xf32>
    %c1_106 = arith.constant 1 : index
    %c0_107 = arith.constant 0 : index
    %c112_108 = arith.constant 112 : index
    %143 = vector.load %arg4[%c1_106, %c0_107, %c112_108] : memref<2x8x256xf32, #tpu.memory_space<vmem>>, vector<1x8x16xf32>
    %144 = vector.shape_cast %143 : vector<1x8x16xf32> to vector<8x16xf32>
    %145 = vector.shape_cast %142 : vector<8x16xf32> to vector<1x8x16xf32>
    tpu.vector_store %arg4[%c1_106, %c0_107, %c112_108], %145 {strides = array<i32>} : memref<2x8x256xf32, #tpu.memory_space<vmem>>, vector<1x8x16xf32>,
    %146 = vector.extract_strided_slice %113 {offsets = [0, 144], sizes = [8, 16], strides = [1, 1]} : vector<8x384xf32> to vector<8x16xf32>
    %c1_109 = arith.constant 1 : index
    %c0_110 = arith.constant 0 : index
    %c128_111 = arith.constant 128 : index
    %147 = vector.load %arg4[%c1_109, %c0_110, %c128_111] : memref<2x8x256xf32, #tpu.memory_space<vmem>>, vector<1x8x16xf32>
    %148 = vector.shape_cast %147 : vector<1x8x16xf32> to vector<8x16xf32>
    %149 = vector.shape_cast %146 : vector<8x16xf32> to vector<1x8x16xf32>
    tpu.vector_store %arg4[%c1_109, %c0_110, %c128_111], %149 {strides = array<i32>} : memref<2x8x256xf32, #tpu.memory_space<vmem>>, vector<1x8x16xf32>,
    %150 = vector.extract_strided_slice %113 {offsets = [0, 162], sizes = [8, 16], strides = [1, 1]} : vector<8x384xf32> to vector<8x16xf32>
    %c1_112 = arith.constant 1 : index
    %c0_113 = arith.constant 0 : index
    %c144_114 = arith.constant 144 : index
    %151 = vector.load %arg4[%c1_112, %c0_113, %c144_114] : memref<2x8x256xf32, #tpu.memory_space<vmem>>, vector<1x8x16xf32>
    %152 = vector.shape_cast %151 : vector<1x8x16xf32> to vector<8x16xf32>
    %153 = vector.shape_cast %150 : vector<8x16xf32> to vector<1x8x16xf32>
    tpu.vector_store %arg4[%c1_112, %c0_113, %c144_114], %153 {strides = array<i32>} : memref<2x8x256xf32, #tpu.memory_space<vmem>>, vector<1x8x16xf32>,
    %154 = vector.extract_strided_slice %113 {offsets = [0, 180], sizes = [8, 16], strides = [1, 1]} : vector<8x384xf32> to vector<8x16xf32>
    %c1_115 = arith.constant 1 : index
    %c0_116 = arith.constant 0 : index
    %c160_117 = arith.constant 160 : index
    %155 = vector.load %arg4[%c1_115, %c0_116, %c160_117] : memref<2x8x256xf32, #tpu.memory_space<vmem>>, vector<1x8x16xf32>
    %156 = vector.shape_cast %155 : vector<1x8x16xf32> to vector<8x16xf32>
    %157 = vector.shape_cast %154 : vector<8x16xf32> to vector<1x8x16xf32>
    tpu.vector_store %arg4[%c1_115, %c0_116, %c160_117], %157 {strides = array<i32>} : memref<2x8x256xf32, #tpu.memory_space<vmem>>, vector<1x8x16xf32>,
    %158 = vector.extract_strided_slice %113 {offsets = [0, 198], sizes = [8, 16], strides = [1, 1]} : vector<8x384xf32> to vector<8x16xf32>
    %c1_118 = arith.constant 1 : index
    %c0_119 = arith.constant 0 : index
    %c176_120 = arith.constant 176 : index
    %159 = vector.load %arg4[%c1_118, %c0_119, %c176_120] : memref<2x8x256xf32, #tpu.memory_space<vmem>>, vector<1x8x16xf32>
    %160 = vector.shape_cast %159 : vector<1x8x16xf32> to vector<8x16xf32>
    %161 = vector.shape_cast %158 : vector<8x16xf32> to vector<1x8x16xf32>
    tpu.vector_store %arg4[%c1_118, %c0_119, %c176_120], %161 {strides = array<i32>} : memref<2x8x256xf32, #tpu.memory_space<vmem>>, vector<1x8x16xf32>,
    %162 = vector.extract_strided_slice %113 {offsets = [0, 216], sizes = [8, 16], strides = [1, 1]} : vector<8x384xf32> to vector<8x16xf32>
    %c1_121 = arith.constant 1 : index
    %c0_122 = arith.constant 0 : index
    %c192_123 = arith.constant 192 : index
    %163 = vector.load %arg4[%c1_121, %c0_122, %c192_123] : memref<2x8x256xf32, #tpu.memory_space<vmem>>, vector<1x8x16xf32>
    %164 = vector.shape_cast %163 : vector<1x8x16xf32> to vector<8x16xf32>
    %165 = vector.shape_cast %162 : vector<8x16xf32> to vector<1x8x16xf32>
    tpu.vector_store %arg4[%c1_121, %c0_122, %c192_123], %165 {strides = array<i32>} : memref<2x8x256xf32, #tpu.memory_space<vmem>>, vector<1x8x16xf32>,
    %166 = vector.extract_strided_slice %113 {offsets = [0, 234], sizes = [8, 16], strides = [1, 1]} : vector<8x384xf32> to vector<8x16xf32>
    %c1_124 = arith.constant 1 : index
    %c0_125 = arith.constant 0 : index
    %c208_126 = arith.constant 208 : index
    %167 = vector.load %arg4[%c1_124, %c0_125, %c208_126] : memref<2x8x256xf32, #tpu.memory_space<vmem>>, vector<1x8x16xf32>
    %168 = vector.shape_cast %167 : vector<1x8x16xf32> to vector<8x16xf32>
    %169 = vector.shape_cast %166 : vector<8x16xf32> to vector<1x8x16xf32>
    tpu.vector_store %arg4[%c1_124, %c0_125, %c208_126], %169 {strides = array<i32>} : memref<2x8x256xf32, #tpu.memory_space<vmem>>, vector<1x8x16xf32>,
    %170 = vector.extract_strided_slice %113 {offsets = [0, 252], sizes = [8, 16], strides = [1, 1]} : vector<8x384xf32> to vector<8x16xf32>
    %c1_127 = arith.constant 1 : index
    %c0_128 = arith.constant 0 : index
    %c224_129 = arith.constant 224 : index
    %171 = vector.load %arg4[%c1_127, %c0_128, %c224_129] : memref<2x8x256xf32, #tpu.memory_space<vmem>>, vector<1x8x16xf32>
    %172 = vector.shape_cast %171 : vector<1x8x16xf32> to vector<8x16xf32>
    %173 = vector.shape_cast %170 : vector<8x16xf32> to vector<1x8x16xf32>
    tpu.vector_store %arg4[%c1_127, %c0_128, %c224_129], %173 {strides = array<i32>} : memref<2x8x256xf32, #tpu.memory_space<vmem>>, vector<1x8x16xf32>,
    %174 = vector.extract_strided_slice %113 {offsets = [0, 270], sizes = [8, 16], strides = [1, 1]} : vector<8x384xf32> to vector<8x16xf32>
    %c1_130 = arith.constant 1 : index
    %c0_131 = arith.constant 0 : index
    %c240_132 = arith.constant 240 : index
    %175 = vector.load %arg4[%c1_130, %c0_131, %c240_132] : memref<2x8x256xf32, #tpu.memory_space<vmem>>, vector<1x8x16xf32>
    %176 = vector.shape_cast %175 : vector<1x8x16xf32> to vector<8x16xf32>
    %177 = vector.shape_cast %174 : vector<8x16xf32> to vector<1x8x16xf32>
    tpu.vector_store %arg4[%c1_130, %c0_131, %c240_132], %177 {strides = array<i32>} : memref<2x8x256xf32, #tpu.memory_space<vmem>>, vector<1x8x16xf32>,
    return
  }
  func.func @transform_0(%arg0: i32) -> (i32, i32, i32) {
    %c0_i32 = arith.constant 0 : i32
    %c0_i32_0 = arith.constant 0 : i32
    %c0_i32_1 = arith.constant 0 : i32
    return %arg0, %c0_i32, %c0_i32_0 : i32, i32, i32
  }
  func.func @transform_1(%arg0: i32) -> (i32, i32) {
    %c0_i32 = arith.constant 0 : i32
    %c0_i32_0 = arith.constant 0 : i32
    %c0_i32_1 = arith.constant 0 : i32
    return %c0_i32, %c0_i32_0 : i32, i32
  }
  func.func @transform_2(%arg0: i32) -> (i32, i32) {
    %c0_i32 = arith.constant 0 : i32
    %c0_i32_0 = arith.constant 0 : i32
    %c0_i32_1 = arith.constant 0 : i32
    return %c0_i32, %c0_i32_0 : i32, i32
  }
  func.func @transform_3(%arg0: i32) -> (i32, i32, i32) {
    %c0_i32 = arith.constant 0 : i32
    %c0_i32_0 = arith.constant 0 : i32
    %c0_i32_1 = arith.constant 0 : i32
    return %arg0, %c0_i32, %c0_i32_0 : i32, i32, i32
  }
}

</mosaic_0001>

<llo_original>
// kernel: conv_block_forward.1
$region0: #{conv_block_forward.1}
  #allocation0 [shape = 'u32[]', space=smem, size = 0x4, offset = 0x4, fixed_abs, tag = 'smem constant byte address 0x4 - core index']
  #allocation1 [shape = 'u32[144,128]{1,0:T(1,128)}', space=vmem, size = 0x12000, scoped, tag = 'internal scratch']
  %s0 = inlined_call_operand.vmem [shape: f32[2,4,432], index: 0, kind: input, shape index: {}]
  %s1 = inlined_call_operand.vmem [shape: f32[8,36], index: 1, kind: input, shape index: {}]
  %s2 = inlined_call_operand.vmem [shape: f32[8,1], index: 2, kind: input, shape index: {}]
  %s3 = inlined_call_operand.vmem [shape: f32[2,8,256], index: 3, kind: output, shape index: {}]
  %s4 = sld [smem:[#allocation0]]
  $region22: #{conv_block_forward.1} parent=0
    _
  %s6 = ssub.s32 1, %s4
  %s7 = scalar_select 0, %s6, %s4
  // Predicated region
  $region2: #{conv_block_forward.1} parent=0 // pred_check
    _
  $region3: #{conv_block_forward.1} parent=0 // pred_check_branch
    %9 = sbr.rel (0) target = $region5
  $region4: #{conv_block_forward.1} parent=0 // pred_region
    _
  $region5: #{conv_block_forward.1} parent=0 // pred_fallthru
    _
  // Predicated region
  $region6: #{conv_block_forward.1} parent=0 // pred_check
    _
  $region7: #{conv_block_forward.1} parent=0 // pred_check_branch
    %11 = sbr.rel (0) target = $region9
  $region8: #{conv_block_forward.1} parent=0 // pred_region
    _
  $region9: #{conv_block_forward.1} parent=0 // pred_fallthru
    _
  // Predicated region
  $region10: #{conv_block_forward.1} parent=0 // pred_check
    _
  $region11: #{conv_block_forward.1} parent=0 // pred_check_branch
    %13 = sbr.rel (0) target = $region13
  $region12: #{conv_block_forward.1} parent=0 // pred_region
    _
  $region13: #{conv_block_forward.1} parent=0 // pred_fallthru
    _
  %v14 = vld [vmem:[%s1] sm:$0xff]
  %v15 = vld [vmem:[%s2] sm:$0xff]
  %v16 = vld [vmem:[%s0] sm:$0xff]
  %v17 = vld [vmem:[%s0 + $0x8] sm:$0xf]
  %v18 = vld [vmem:[%s0 + $0x8] sm:$0xff]
  %v20 = vcombine.high %v16, %v16
  %v23 = vcombine.low %v16, %v16
  %v24 = vcombine.low %v18, %v18
  %25 = vrot.lane.b32.xlu0 %v23, 127
  %v26 = vpop.permute.xlu0 %25
  %27 = vrot.lane.b32.xlu0 %v16, 127
  %v28 = vpop.permute.xlu0 %27
  %29 = vrot.lane.b32.xlu0 %v24, 127
  %v30 = vpop.permute.xlu0 %29
  %31 = vrot.lane.b32.xlu0 %v18, 127
  %v32 = vpop.permute.xlu0 %31
  %vm33 = vcmask 1039360
  %v34 = vsel %vm33, %v26, %v28
  %v35 = vsel %vm33, %v28, %v30
  %v36 = vsel %vm33, %v30, %v32
  %v40 = vcombine.high %v18, %v18
  %41 = vrot.lane.b32.xlu0 %v16, 126
  %v42 = vpop.permute.xlu0 %41
  %43 = vrot.lane.b32.xlu0 %v20, 126
  %v44 = vpop.permute.xlu0 %43
  %45 = vrot.lane.b32.xlu0 %v18, 126
  %v46 = vpop.permute.xlu0 %45
  %47 = vrot.lane.b32.xlu0 %v40, 126
  %v48 = vpop.permute.xlu0 %47
  %vm49 = vcmask 1031168
  %v50 = vsel %vm49, %v42, %v44
  %v51 = vsel %vm49, %v44, %v46
  %v52 = vsel %vm49, %v46, %v48
  %56 = vrot.lane.b32.xlu0 %v23, 110
  %v57 = vpop.permute.xlu0 %56
  %58 = vrot.lane.b32.xlu0 %v16, 110
  %v59 = vpop.permute.xlu0 %58
  %60 = vrot.lane.b32.xlu0 %v24, 110
  %v61 = vpop.permute.xlu0 %60
  %62 = vrot.lane.b32.xlu0 %v18, 110
  %v63 = vpop.permute.xlu0 %62
  %vm64 = vcmask 900096
  %v65 = vsel %vm64, %v57, %v59
  %v66 = vsel %vm64, %v59, %v61
  %v67 = vsel %vm64, %v61, %v63
  %71 = vrot.lane.b32.xlu0 %v16, 109
  %v72 = vpop.permute.xlu0 %71
  %73 = vrot.lane.b32.xlu0 %v20, 109
  %v74 = vpop.permute.xlu0 %73
  %75 = vrot.lane.b32.xlu0 %v18, 109
  %v76 = vpop.permute.xlu0 %75
  %77 = vrot.lane.b32.xlu0 %v40, 109
  %v78 = vpop.permute.xlu0 %77
  %vm79 = vcmask 891904
  %v80 = vsel %vm79, %v72, %v74
  %v81 = vsel %vm79, %v74, %v76
  %v82 = vsel %vm79, %v76, %v78
  %86 = vrot.lane.b32.xlu0 %v23, 108
  %v87 = vpop.permute.xlu0 %86
  %88 = vrot.lane.b32.xlu0 %v16, 108
  %v89 = vpop.permute.xlu0 %88
  %90 = vrot.lane.b32.xlu0 %v24, 108
  %v91 = vpop.permute.xlu0 %90
  %92 = vrot.lane.b32.xlu0 %v18, 108
  %v93 = vpop.permute.xlu0 %92
  %vm94 = vcmask 883712
  %v95 = vsel %vm94, %v87, %v89
  %v96 = vsel %vm94, %v89, %v91
  %v97 = vsel %vm94, %v91, %v93
  %101 = vrot.lane.b32.xlu0 %v16, 92
  %v102 = vpop.permute.xlu0 %101
  %103 = vrot.lane.b32.xlu0 %v20, 92
  %v104 = vpop.permute.xlu0 %103
  %105 = vrot.lane.b32.xlu0 %v18, 92
  %v106 = vpop.permute.xlu0 %105
  %107 = vrot.lane.b32.xlu0 %v40, 92
  %v108 = vpop.permute.xlu0 %107
  %vm109 = vcmask 752640
  %v110 = vsel %vm109, %v102, %v104
  %v111 = vsel %vm109, %v104, %v106
  %v112 = vsel %vm109, %v106, %v108
  %116 = vrot.lane.b32.xlu0 %v23, 91
  %v117 = vpop.permute.xlu0 %116
  %118 = vrot.lane.b32.xlu0 %v16, 91
  %v119 = vpop.permute.xlu0 %118
  %120 = vrot.lane.b32.xlu0 %v24, 91
  %v121 = vpop.permute.xlu0 %120
  %122 = vrot.lane.b32.xlu0 %v18, 91
  %v123 = vpop.permute.xlu0 %122
  %vm124 = vcmask 744448
  %v125 = vsel %vm124, %v117, %v119
  %v126 = vsel %vm124, %v119, %v121
  %v127 = vsel %vm124, %v121, %v123
  %131 = vrot.lane.b32.xlu0 %v16, 90
  %v132 = vpop.permute.xlu0 %131
  %133 = vrot.lane.b32.xlu0 %v20, 90
  %v134 = vpop.permute.xlu0 %133
  %135 = vrot.lane.b32.xlu0 %v18, 90
  %v136 = vpop.permute.xlu0 %135
  %137 = vrot.lane.b32.xlu0 %v40, 90
  %v138 = vpop.permute.xlu0 %137
  %vm139 = vcmask 736256
  %v140 = vsel %vm139, %v132, %v134
  %v141 = vsel %vm139, %v134, %v136
  %v142 = vsel %vm139, %v136, %v138
  %vm143 = vcmask 1043456
  %v144 = vsel %vm143, %v16, %v34
  %v145 = vsel %vm143, %v20, %v35
  %v146 = vsel %vm143, %v17, %v36
  %v147 = vsel %vm143, %v50, %v65
  %v148 = vsel %vm143, %v51, %v66
  %v149 = vsel %vm143, %v52, %v67
  %v150 = vsel %vm143, %v80, %v95
  %v151 = vsel %vm143, %v81, %v96
  %v152 = vsel %vm143, %v82, %v97
  %v153 = vsel %vm143, %v110, %v125
  %v154 = vsel %vm143, %v111, %v126
  %v155 = vsel %vm143, %v112, %v127
  %157 = vset.pattern.permute.xlu0 0
  %158 = vperm.xlu0 %157, %v15
  %v159 = vpop.permute.xlu0 %158
  %vm161 = vcmask 293888
  %v163 = vsel %vm161, %v14, 0
  %v165 = vsel %vm143, %v140, 0
  %v167 = vsel %vm143, %v141, 0
  %v169 = vsel %vm143, %v142, 0
  %171 = vmatprep.subr.mxu0 0.0
  %172 = vmatpush1.msra.mxu0 0.0
  %173 = vmatprep.subr.mxu0 0.0
  %174 = vmatpush1.msra.mxu0 0.0
  %175 = vmatprep.subr.mxu0 0.0
  %176 = vmatpush1.msra.mxu0 0.0
  %177 = vmatprep.subr.mxu0 0.0
  %178 = vmatpush1.msra.mxu0 0.0
  %179 = vmatprep.subr.mxu0 0.0
  %180 = vmatpush1.msra.mxu0 0.0
  %181 = vmatprep.subr.mxu0 0.0
  %182 = vmatpush1.msra.mxu0 0.0
  %183 = vmatprep.subr.mxu0 0.0
  %184 = vmatpush1.msra.mxu0 0.0
  %185 = vmatprep.subr.mxu0 0.0
  %186 = vmatpush1.msra.mxu0 0.0
  %187 = vmatprep.subr.mxu0 0.0
  %188 = vmatpush1.msra.mxu0 0.0
  %189 = vmatprep.subr.mxu0 0.0
  %190 = vmatpush1.msra.mxu0 0.0
  %191 = vmatprep.subr.mxu0 0.0
  %192 = vmatpush1.msra.mxu0 0.0
  %193 = vmatprep.subr.mxu0 %v167
  %194 = vmatpush1.msra.mxu0 %v165
  %195 = vmatprep.subr.mxu0 %v154
  %196 = vmatpush1.msra.mxu0 %v153
  %197 = vmatprep.subr.mxu0 %v151
  %198 = vmatpush1.msra.mxu0 %v150
  %199 = vmatprep.subr.mxu0 %v148
  %200 = vmatpush1.msra.mxu0 %v147
  %201 = vmatprep.subr.mxu0 %v145
  %202 = vmatpush1.msra.mxu0 %v144
  %203 = vmatprep.subr.mxu0 0.0
  %204 = vmatpush2.msra.mxu0 0.0
  %205 = vmatprep.subr.mxu0 0.0
  %206 = vmatpush2.msra.mxu0 0.0
  %207 = vmatprep.subr.mxu0 0.0
  %208 = vmatpush2.msra.mxu0 0.0
  %209 = vmatprep.subr.mxu0 0.0
  %210 = vmatpush2.msra.mxu0 0.0
  %211 = vmatprep.subr.mxu0 0.0
  %212 = vmatpush2.msra.mxu0 0.0
  %213 = vmatprep.subr.mxu0 0.0
  %214 = vmatpush2.msra.mxu0 0.0
  %215 = vmatprep.subr.mxu0 0.0
  %216 = vmatpush2.msra.mxu0 0.0
  %217 = vmatprep.subr.mxu0 0.0
  %218 = vmatpush2.msra.mxu0 0.0
  %219 = vmatprep.subr.mxu0 0.0
  %220 = vmatpush2.msra.mxu0 0.0
  %221 = vmatprep.subr.mxu0 0.0
  %222 = vmatpush2.msra.mxu0 0.0
  %223 = vmatprep.subr.mxu0 0.0
  %224 = vmatpush2.msra.mxu0 0.0
  %225 = vmatprep.subr.mxu0 0.0
  %226 = vmatpush2.msra.mxu0 0.0
  %227 = vmatprep.subr.mxu0 0.0
  %228 = vmatpush2.msra.mxu0 0.0
  %229 = vmatprep.subr.mxu0 0.0
  %230 = vmatpush2.msra.mxu0 0.0
  %231 = vmatprep.subr.mxu0 0.0
  %232 = vmatpush2.msra.mxu0 0.0
  %233 = vmatprep.subr.mxu0 0.0
  %234 = vmatpush2.msra.mxu0 0.0
  %235 = vmatprep.mubr.f32.mxu0 0.0
  %236 = vmatmul.mubr.f32.gmra.mxu0 %v163
  %v237 = vpop.f32.mrf.mxu0
  %v238 = vadd.f32 %v159, %v237
  %v239 = vpop.f32.mrf.mxu0
  %v240 = vadd.f32 %v159, %v239
  %241 = vdwg.mxu0
  %242 = vmatprep.subr.mxu0 0.0
  %243 = vmatpush1.msra.mxu0 0.0
  %244 = vmatprep.subr.mxu0 0.0
  %245 = vmatpush1.msra.mxu0 0.0
  %246 = vmatprep.subr.mxu0 0.0
  %247 = vmatpush1.msra.mxu0 0.0
  %248 = vmatprep.subr.mxu0 0.0
  %249 = vmatpush1.msra.mxu0 0.0
  %250 = vmatprep.subr.mxu0 0.0
  %251 = vmatpush1.msra.mxu0 0.0
  %252 = vmatprep.subr.mxu0 0.0
  %253 = vmatpush1.msra.mxu0 0.0
  %254 = vmatprep.subr.mxu0 0.0
  %255 = vmatpush1.msra.mxu0 0.0
  %256 = vmatprep.subr.mxu0 0.0
  %257 = vmatpush1.msra.mxu0 0.0
  %258 = vmatprep.subr.mxu0 0.0
  %259 = vmatpush1.msra.mxu0 0.0
  %260 = vmatprep.subr.mxu0 0.0
  %261 = vmatpush1.msra.mxu0 0.0
  %262 = vmatprep.subr.mxu0 0.0
  %263 = vmatpush1.msra.mxu0 0.0
  %264 = vmatprep.subr.mxu0 0.0
  %265 = vmatpush1.msra.mxu0 %v169
  %266 = vmatprep.subr.mxu0 0.0
  %267 = vmatpush1.msra.mxu0 %v155
  %268 = vmatprep.subr.mxu0 0.0
  %269 = vmatpush1.msra.mxu0 %v152
  %270 = vmatprep.subr.mxu0 0.0
  %271 = vmatpush1.msra.mxu0 %v149
  %272 = vmatprep.subr.mxu0 0.0
  %273 = vmatpush1.msra.mxu0 %v146
  %274 = vmatprep.subr.mxu0 0.0
  %275 = vmatpush2.msra.mxu0 0.0
  %276 = vmatprep.subr.mxu0 0.0
  %277 = vmatpush2.msra.mxu0 0.0
  %278 = vmatprep.subr.mxu0 0.0
  %279 = vmatpush2.msra.mxu0 0.0
  %280 = vmatprep.subr.mxu0 0.0
  %281 = vmatpush2.msra.mxu0 0.0
  %282 = vmatprep.subr.mxu0 0.0
  %283 = vmatpush2.msra.mxu0 0.0
  %284 = vmatprep.subr.mxu0 0.0
  %285 = vmatpush2.msra.mxu0 0.0
  %286 = vmatprep.subr.mxu0 0.0
  %287 = vmatpush2.msra.mxu0 0.0
  %288 = vmatprep.subr.mxu0 0.0
  %289 = vmatpush2.msra.mxu0 0.0
  %290 = vmatprep.subr.mxu0 0.0
  %291 = vmatpush2.msra.mxu0 0.0
  %292 = vmatprep.subr.mxu0 0.0
  %293 = vmatpush2.msra.mxu0 0.0
  %294 = vmatprep.subr.mxu0 0.0
  %295 = vmatpush2.msra.mxu0 0.0
  %296 = vmatprep.subr.mxu0 0.0
  %297 = vmatpush2.msra.mxu0 0.0
  %298 = vmatprep.subr.mxu0 0.0
  %299 = vmatpush2.msra.mxu0 0.0
  %300 = vmatprep.subr.mxu0 0.0
  %301 = vmatpush2.msra.mxu0 0.0
  %302 = vmatprep.subr.mxu0 0.0
  %303 = vmatpush2.msra.mxu0 0.0
  %304 = vmatprep.subr.mxu0 0.0
  %305 = vmatpush2.msra.mxu0 0.0
  %306 = vmatprep.mubr.f32.mxu0 0.0
  %307 = vmatmul.mubr.f32.gmra.mxu0 %v163
  %v308 = vpop.f32.mrf.mxu0
  %v309 = vadd.f32 %v159, %v308
  %v310 = vpop.f32.mrf.mxu0
  %311 = vdwg.mxu0
  %v312 = vmax.f32 %v238, 0.0
  %v313 = vmax.f32 %v240, 0.0
  %v314 = vmax.f32 %v309, 0.0
  %vm315 = vcmask 130048
  %316 = vst.msk [vmem:[%s3] sm:$0xff] %vm315, %v312
  %318 = vrot.lane.b32.xlu0 %v312, 126
  %v319 = vpop.permute.xlu0 %318
  %vm321 = vcmask 261248
  %322 = vst.msk [vmem:[%s3] sm:$0xff] %vm321, %v319
  %323 = vrot.lane.b32.xlu0 %v312, 124
  %v324 = vpop.permute.xlu0 %323
  %vm326 = vcmask 392448
  %327 = vst.msk [vmem:[%s3] sm:$0xff] %vm326, %v324
  %328 = vrot.lane.b32.xlu0 %v312, 122
  %v329 = vpop.permute.xlu0 %328
  %vm331 = vcmask 523648
  %332 = vst.msk [vmem:[%s3] sm:$0xff] %vm331, %v329
  %333 = vrot.lane.b32.xlu0 %v312, 120
  %v334 = vpop.permute.xlu0 %333
  %vm336 = vcmask 654848
  %337 = vst.msk [vmem:[%s3] sm:$0xff] %vm336, %v334
  %338 = vrot.lane.b32.xlu0 %v312, 118
  %v339 = vpop.permute.xlu0 %338
  %vm341 = vcmask 786048
  %342 = vst.msk [vmem:[%s3] sm:$0xff] %vm341, %v339
  %343 = vrot.lane.b32.xlu0 %v312, 116
  %v344 = vpop.permute.xlu0 %343
  %vm346 = vcmask 917248
  %347 = vst.msk [vmem:[%s3] sm:$0xff] %vm346, %v344
  %349 = vrot.lane.b32.xlu0 %v312, 114
  %v350 = vpop.permute.xlu0 %349
  %351 = vrot.lane.b32.xlu0 %v313, 114
  %v352 = vpop.permute.xlu0 %351
  %vm353 = vcmask 932864
  %v354 = vsel %vm353, %v350, %v352
  %vm356 = vcmask 1048448
  %357 = vst.msk [vmem:[%s3] sm:$0xff] %vm356, %v354
  %358 = vrot.lane.b32.xlu0 %v313, 112
  %v359 = vpop.permute.xlu0 %358
  %361 = vst.msk [vmem:[%s3 + $0x8] sm:$0xff] %vm315, %v359
  %362 = vrot.lane.b32.xlu0 %v313, 110
  %v363 = vpop.permute.xlu0 %362
  %365 = vst.msk [vmem:[%s3 + $0x8] sm:$0xff] %vm321, %v363
  %366 = vrot.lane.b32.xlu0 %v313, 108
  %v367 = vpop.permute.xlu0 %366
  %369 = vst.msk [vmem:[%s3 + $0x8] sm:$0xff] %vm326, %v367
  %370 = vrot.lane.b32.xlu0 %v313, 106
  %v371 = vpop.permute.xlu0 %370
  %373 = vst.msk [vmem:[%s3 + $0x8] sm:$0xff] %vm331, %v371
  %374 = vrot.lane.b32.xlu0 %v313, 104
  %v375 = vpop.permute.xlu0 %374
  %377 = vst.msk [vmem:[%s3 + $0x8] sm:$0xff] %vm336, %v375
  %378 = vrot.lane.b32.xlu0 %v313, 102
  %v379 = vpop.permute.xlu0 %378
  %381 = vst.msk [vmem:[%s3 + $0x8] sm:$0xff] %vm341, %v379
  %383 = vrot.lane.b32.xlu0 %v313, 100
  %v384 = vpop.permute.xlu0 %383
  %385 = vrot.lane.b32.xlu0 %v314, 100
  %v386 = vpop.permute.xlu0 %385
  %vm387 = vcmask 818176
  %v388 = vsel %vm387, %v384, %v386
  %390 = vst.msk [vmem:[%s3 + $0x8] sm:$0xff] %vm346, %v388
  %391 = vrot.lane.b32.xlu0 %v314, 98
  %v392 = vpop.permute.xlu0 %391
  %394 = vst.msk [vmem:[%s3 + $0x8] sm:$0xff] %vm356, %v392
  %s395 = scalar_lea.vmem %s0, 16
  %v396 = vld [vmem:[%s395] sm:$0xff]
  %v397 = vld [vmem:[%s395 + $0x8] sm:$0xf]
  %v398 = vld [vmem:[%s395 + $0x8] sm:$0xff]
  %v400 = vcombine.high %v396, %v396
  %v403 = vcombine.low %v396, %v396
  %v404 = vcombine.low %v398, %v398
  %405 = vrot.lane.b32.xlu0 %v403, 127
  %v406 = vpop.permute.xlu0 %405
  %407 = vrot.lane.b32.xlu0 %v396, 127
  %v408 = vpop.permute.xlu0 %407
  %409 = vrot.lane.b32.xlu0 %v404, 127
  %v410 = vpop.permute.xlu0 %409
  %411 = vrot.lane.b32.xlu0 %v398, 127
  %v412 = vpop.permute.xlu0 %411
  %v413 = vsel %vm33, %v406, %v408
  %v414 = vsel %vm33, %v408, %v410
  %v415 = vsel %vm33, %v410, %v412
  %v419 = vcombine.high %v398, %v398
  %420 = vrot.lane.b32.xlu0 %v396, 126
  %v421 = vpop.permute.xlu0 %420
  %422 = vrot.lane.b32.xlu0 %v400, 126
  %v423 = vpop.permute.xlu0 %422
  %424 = vrot.lane.b32.xlu0 %v398, 126
  %v425 = vpop.permute.xlu0 %424
  %426 = vrot.lane.b32.xlu0 %v419, 126
  %v427 = vpop.permute.xlu0 %426
  %v428 = vsel %vm49, %v421, %v423
  %v429 = vsel %vm49, %v423, %v425
  %v430 = vsel %vm49, %v425, %v427
  %434 = vrot.lane.b32.xlu0 %v403, 110
  %v435 = vpop.permute.xlu0 %434
  %436 = vrot.lane.b32.xlu0 %v396, 110
  %v437 = vpop.permute.xlu0 %436
  %438 = vrot.lane.b32.xlu0 %v404, 110
  %v439 = vpop.permute.xlu0 %438
  %440 = vrot.lane.b32.xlu0 %v398, 110
  %v441 = vpop.permute.xlu0 %440
  %v442 = vsel %vm64, %v435, %v437
  %v443 = vsel %vm64, %v437, %v439
  %v444 = vsel %vm64, %v439, %v441
  %448 = vrot.lane.b32.xlu0 %v396, 109
  %v449 = vpop.permute.xlu0 %448
  %450 = vrot.lane.b32.xlu0 %v400, 109
  %v451 = vpop.permute.xlu0 %450
  %452 = vrot.lane.b32.xlu0 %v398, 109
  %v453 = vpop.permute.xlu0 %452
  %454 = vrot.lane.b32.xlu0 %v419, 109
  %v455 = vpop.permute.xlu0 %454
  %v456 = vsel %vm79, %v449, %v451
  %v457 = vsel %vm79, %v451, %v453
  %v458 = vsel %vm79, %v453, %v455
  %462 = vrot.lane.b32.xlu0 %v403, 108
  %v463 = vpop.permute.xlu0 %462
  %464 = vrot.lane.b32.xlu0 %v396, 108
  %v465 = vpop.permute.xlu0 %464
  %466 = vrot.lane.b32.xlu0 %v404, 108
  %v467 = vpop.permute.xlu0 %466
  %468 = vrot.lane.b32.xlu0 %v398, 108
  %v469 = vpop.permute.xlu0 %468
  %v470 = vsel %vm94, %v463, %v465
  %v471 = vsel %vm94, %v465, %v467
  %v472 = vsel %vm94, %v467, %v469
  %476 = vrot.lane.b32.xlu0 %v396, 92
  %v477 = vpop.permute.xlu0 %476
  %478 = vrot.lane.b32.xlu0 %v400, 92
  %v479 = vpop.permute.xlu0 %478
  %480 = vrot.lane.b32.xlu0 %v398, 92
  %v481 = vpop.permute.xlu0 %480
  %482 = vrot.lane.b32.xlu0 %v419, 92
  %v483 = vpop.permute.xlu0 %482
  %v484 = vsel %vm109, %v477, %v479
  %v485 = vsel %vm109, %v479, %v481
  %v486 = vsel %vm109, %v481, %v483
  %490 = vrot.lane.b32.xlu0 %v403, 91
  %v491 = vpop.permute.xlu0 %490
  %492 = vrot.lane.b32.xlu0 %v396, 91
  %v493 = vpop.permute.xlu0 %492
  %494 = vrot.lane.b32.xlu0 %v404, 91
  %v495 = vpop.permute.xlu0 %494
  %496 = vrot.lane.b32.xlu0 %v398, 91
  %v497 = vpop.permute.xlu0 %496
  %v498 = vsel %vm124, %v491, %v493
  %v499 = vsel %vm124, %v493, %v495
  %v500 = vsel %vm124, %v495, %v497
  %504 = vrot.lane.b32.xlu0 %v396, 90
  %v505 = vpop.permute.xlu0 %504
  %506 = vrot.lane.b32.xlu0 %v400, 90
  %v507 = vpop.permute.xlu0 %506
  %508 = vrot.lane.b32.xlu0 %v398, 90
  %v509 = vpop.permute.xlu0 %508
  %510 = vrot.lane.b32.xlu0 %v419, 90
  %v511 = vpop.permute.xlu0 %510
  %v512 = vsel %vm139, %v505, %v507
  %v513 = vsel %vm139, %v507, %v509
  %v514 = vsel %vm139, %v509, %v511
  %v515 = vsel %vm143, %v396, %v413
  %v516 = vsel %vm143, %v400, %v414
  %v517 = vsel %vm143, %v397, %v415
  %v518 = vsel %vm143, %v428, %v442
  %v519 = vsel %vm143, %v429, %v443
  %v520 = vsel %vm143, %v430, %v444
  %v521 = vsel %vm143, %v456, %v470
  %v522 = vsel %vm143, %v457, %v471
  %v523 = vsel %vm143, %v458, %v472
  %v524 = vsel %vm143, %v484, %v498
  %v525 = vsel %vm143, %v485, %v499
  %v526 = vsel %vm143, %v486, %v500
  %v527 = vsel %vm143, %v512, 0
  %v529 = vsel %vm143, %v513, 0
  %v531 = vsel %vm143, %v514, 0
  %533 = vmatprep.subr.mxu0 0.0
  %534 = vmatpush1.msra.mxu0 0.0
  %535 = vmatprep.subr.mxu0 0.0
  %536 = vmatpush1.msra.mxu0 0.0
  %537 = vmatprep.subr.mxu0 0.0
  %538 = vmatpush1.msra.mxu0 0.0
  %539 = vmatprep.subr.mxu0 0.0
  %540 = vmatpush1.msra.mxu0 0.0
  %541 = vmatprep.subr.mxu0 0.0
  %542 = vmatpush1.msra.mxu0 0.0
  %543 = vmatprep.subr.mxu0 0.0
  %544 = vmatpush1.msra.mxu0 0.0
  %545 = vmatprep.subr.mxu0 0.0
  %546 = vmatpush1.msra.mxu0 0.0
  %547 = vmatprep.subr.mxu0 0.0
  %548 = vmatpush1.msra.mxu0 0.0
  %549 = vmatprep.subr.mxu0 0.0
  %550 = vmatpush1.msra.mxu0 0.0
  %551 = vmatprep.subr.mxu0 0.0
  %552 = vmatpush1.msra.mxu0 0.0
  %553 = vmatprep.subr.mxu0 0.0
  %554 = vmatpush1.msra.mxu0 0.0
  %555 = vmatprep.subr.mxu0 %v529
  %556 = vmatpush1.msra.mxu0 %v527
  %557 = vmatprep.subr.mxu0 %v525
  %558 = vmatpush1.msra.mxu0 %v524
  %559 = vmatprep.subr.mxu0 %v522
  %560 = vmatpush1.msra.mxu0 %v521
  %561 = vmatprep.subr.mxu0 %v519
  %562 = vmatpush1.msra.mxu0 %v518
  %563 = vmatprep.subr.mxu0 %v516
  %564 = vmatpush1.msra.mxu0 %v515
  %565 = vmatprep.subr.mxu0 0.0
  %566 = vmatpush2.msra.mxu0 0.0
  %567 = vmatprep.subr.mxu0 0.0
  %568 = vmatpush2.msra.mxu0 0.0
  %569 = vmatprep.subr.mxu0 0.0
  %570 = vmatpush2.msra.mxu0 0.0
  %571 = vmatprep.subr.mxu0 0.0
  %572 = vmatpush2.msra.mxu0 0.0
  %573 = vmatprep.subr.mxu0 0.0
  %574 = vmatpush2.msra.mxu0 0.0
  %575 = vmatprep.subr.mxu0 0.0
  %576 = vmatpush2.msra.mxu0 0.0
  %577 = vmatprep.subr.mxu0 0.0
  %578 = vmatpush2.msra.mxu0 0.0
  %579 = vmatprep.subr.mxu0 0.0
  %580 = vmatpush2.msra.mxu0 0.0
  %581 = vmatprep.subr.mxu0 0.0
  %582 = vmatpush2.msra.mxu0 0.0
  %583 = vmatprep.subr.mxu0 0.0
  %584 = vmatpush2.msra.mxu0 0.0
  %585 = vmatprep.subr.mxu0 0.0
  %586 = vmatpush2.msra.mxu0 0.0
  %587 = vmatprep.subr.mxu0 0.0
  %588 = vmatpush2.msra.mxu0 0.0
  %589 = vmatprep.subr.mxu0 0.0
  %590 = vmatpush2.msra.mxu0 0.0
  %591 = vmatprep.subr.mxu0 0.0
  %592 = vmatpush2.msra.mxu0 0.0
  %593 = vmatprep.subr.mxu0 0.0
  %594 = vmatpush2.msra.mxu0 0.0
  %595 = vmatprep.subr.mxu0 0.0
  %596 = vmatpush2.msra.mxu0 0.0
  %597 = vmatprep.mubr.f32.mxu0 0.0
  %598 = vmatmul.mubr.f32.gmra.mxu0 %v163
  %v599 = vpop.f32.mrf.mxu0
  %v600 = vadd.f32 %v159, %v599
  %v601 = vpop.f32.mrf.mxu0
  %v602 = vadd.f32 %v159, %v601
  %603 = vdwg.mxu0
  %604 = vmatprep.subr.mxu0 0.0
  %605 = vmatpush1.msra.mxu0 0.0
  %606 = vmatprep.subr.mxu0 0.0
  %607 = vmatpush1.msra.mxu0 0.0
  %608 = vmatprep.subr.mxu0 0.0
  %609 = vmatpush1.msra.mxu0 0.0
  %610 = vmatprep.subr.mxu0 0.0
  %611 = vmatpush1.msra.mxu0 0.0
  %612 = vmatprep.subr.mxu0 0.0
  %613 = vmatpush1.msra.mxu0 0.0
  %614 = vmatprep.subr.mxu0 0.0
  %615 = vmatpush1.msra.mxu0 0.0
  %616 = vmatprep.subr.mxu0 0.0
  %617 = vmatpush1.msra.mxu0 0.0
  %618 = vmatprep.subr.mxu0 0.0
  %619 = vmatpush1.msra.mxu0 0.0
  %620 = vmatprep.subr.mxu0 0.0
  %621 = vmatpush1.msra.mxu0 0.0
  %622 = vmatprep.subr.mxu0 0.0
  %623 = vmatpush1.msra.mxu0 0.0
  %624 = vmatprep.subr.mxu0 0.0
  %625 = vmatpush1.msra.mxu0 0.0
  %626 = vmatprep.subr.mxu0 0.0
  %627 = vmatpush1.msra.mxu0 %v531
  %628 = vmatprep.subr.mxu0 0.0
  %629 = vmatpush1.msra.mxu0 %v526
  %630 = vmatprep.subr.mxu0 0.0
  %631 = vmatpush1.msra.mxu0 %v523
  %632 = vmatprep.subr.mxu0 0.0
  %633 = vmatpush1.msra.mxu0 %v520
  %634 = vmatprep.subr.mxu0 0.0
  %635 = vmatpush1.msra.mxu0 %v517
  %636 = vmatprep.subr.mxu0 0.0
  %637 = vmatpush2.msra.mxu0 0.0
  %638 = vmatprep.subr.mxu0 0.0
  %639 = vmatpush2.msra.mxu0 0.0
  %640 = vmatprep.subr.mxu0 0.0
  %641 = vmatpush2.msra.mxu0 0.0
  %642 = vmatprep.subr.mxu0 0.0
  %643 = vmatpush2.msra.mxu0 0.0
  %644 = vmatprep.subr.mxu0 0.0
  %645 = vmatpush2.msra.mxu0 0.0
  %646 = vmatprep.subr.mxu0 0.0
  %647 = vmatpush2.msra.mxu0 0.0
  %648 = vmatprep.subr.mxu0 0.0
  %649 = vmatpush2.msra.mxu0 0.0
  %650 = vmatprep.subr.mxu0 0.0
  %651 = vmatpush2.msra.mxu0 0.0
  %652 = vmatprep.subr.mxu0 0.0
  %653 = vmatpush2.msra.mxu0 0.0
  %654 = vmatprep.subr.mxu0 0.0
  %655 = vmatpush2.msra.mxu0 0.0
  %656 = vmatprep.subr.mxu0 0.0
  %657 = vmatpush2.msra.mxu0 0.0
  %658 = vmatprep.subr.mxu0 0.0
  %659 = vmatpush2.msra.mxu0 0.0
  %660 = vmatprep.subr.mxu0 0.0
  %661 = vmatpush2.msra.mxu0 0.0
  %662 = vmatprep.subr.mxu0 0.0
  %663 = vmatpush2.msra.mxu0 0.0
  %664 = vmatprep.subr.mxu0 0.0
  %665 = vmatpush2.msra.mxu0 0.0
  %666 = vmatprep.subr.mxu0 0.0
  %667 = vmatpush2.msra.mxu0 0.0
  %668 = vmatprep.mubr.f32.mxu0 0.0
  %669 = vmatmul.mubr.f32.gmra.mxu0 %v163
  %v670 = vpop.f32.mrf.mxu0
  %v671 = vadd.f32 %v159, %v670
  %v672 = vpop.f32.mrf.mxu0
  %673 = vdwg.mxu0
  %v674 = vmax.f32 %v600, 0.0
  %v675 = vmax.f32 %v602, 0.0
  %v676 = vmax.f32 %v671, 0.0
  %s677 = scalar_lea.vmem %s3, 16
  %678 = vst.msk [vmem:[%s677] sm:$0xff] %vm315, %v674
  %680 = vrot.lane.b32.xlu0 %v674, 126
  %v681 = vpop.permute.xlu0 %680
  %683 = vst.msk [vmem:[%s677] sm:$0xff] %vm321, %v681
  %684 = vrot.lane.b32.xlu0 %v674, 124
  %v685 = vpop.permute.xlu0 %684
  %687 = vst.msk [vmem:[%s677] sm:$0xff] %vm326, %v685
  %688 = vrot.lane.b32.xlu0 %v674, 122
  %v689 = vpop.permute.xlu0 %688
  %691 = vst.msk [vmem:[%s677] sm:$0xff] %vm331, %v689
  %692 = vrot.lane.b32.xlu0 %v674, 120
  %v693 = vpop.permute.xlu0 %692
  %695 = vst.msk [vmem:[%s677] sm:$0xff] %vm336, %v693
  %696 = vrot.lane.b32.xlu0 %v674, 118
  %v697 = vpop.permute.xlu0 %696
  %699 = vst.msk [vmem:[%s677] sm:$0xff] %vm341, %v697
  %700 = vrot.lane.b32.xlu0 %v674, 116
  %v701 = vpop.permute.xlu0 %700
  %703 = vst.msk [vmem:[%s677] sm:$0xff] %vm346, %v701
  %705 = vrot.lane.b32.xlu0 %v674, 114
  %v706 = vpop.permute.xlu0 %705
  %707 = vrot.lane.b32.xlu0 %v675, 114
  %v708 = vpop.permute.xlu0 %707
  %v709 = vsel %vm353, %v706, %v708
  %711 = vst.msk [vmem:[%s677] sm:$0xff] %vm356, %v709
  %712 = vrot.lane.b32.xlu0 %v675, 112
  %v713 = vpop.permute.xlu0 %712
  %715 = vst.msk [vmem:[%s677 + $0x8] sm:$0xff] %vm315, %v713
  %716 = vrot.lane.b32.xlu0 %v675, 110
  %v717 = vpop.permute.xlu0 %716
  %719 = vst.msk [vmem:[%s677 + $0x8] sm:$0xff] %vm321, %v717
  %720 = vrot.lane.b32.xlu0 %v675, 108
  %v721 = vpop.permute.xlu0 %720
  %723 = vst.msk [vmem:[%s677 + $0x8] sm:$0xff] %vm326, %v721
  %724 = vrot.lane.b32.xlu0 %v675, 106
  %v725 = vpop.permute.xlu0 %724
  %727 = vst.msk [vmem:[%s677 + $0x8] sm:$0xff] %vm331, %v725
  %728 = vrot.lane.b32.xlu0 %v675, 104
  %v729 = vpop.permute.xlu0 %728
  %731 = vst.msk [vmem:[%s677 + $0x8] sm:$0xff] %vm336, %v729
  %732 = vrot.lane.b32.xlu0 %v675, 102
  %v733 = vpop.permute.xlu0 %732
  %735 = vst.msk [vmem:[%s677 + $0x8] sm:$0xff] %vm341, %v733
  %737 = vrot.lane.b32.xlu0 %v675, 100
  %v738 = vpop.permute.xlu0 %737
  %739 = vrot.lane.b32.xlu0 %v676, 100
  %v740 = vpop.permute.xlu0 %739
  %v741 = vsel %vm387, %v738, %v740
  %743 = vst.msk [vmem:[%s677 + $0x8] sm:$0xff] %vm346, %v741
  %744 = vrot.lane.b32.xlu0 %v676, 98
  %v745 = vpop.permute.xlu0 %744
  %747 = vst.msk [vmem:[%s677 + $0x8] sm:$0xff] %vm356, %v745
  // Predicated region
  $region14: #{conv_block_forward.1} parent=0 // pred_check
    _
  $region15: #{conv_block_forward.1} parent=0 // pred_check_branch
    %749 = sbr.rel (0) target = $region17
  $region16: #{conv_block_forward.1} parent=0 // pred_region
    _
  $region17: #{conv_block_forward.1} parent=0 // pred_fallthru
    _
  // Predicated region
  $region18: #{conv_block_forward.1} parent=0 // pred_check
    _
  $region19: #{conv_block_forward.1} parent=0 // pred_check_branch
    %751 = sbr.rel (0) target = $region21
  $region20: #{conv_block_forward.1} parent=0 // pred_region
    _
  $region21: #{conv_block_forward.1} parent=0 // pred_fallthru
    _

</llo_original>
